<compile_context>
chip_gen: v7x
topology: tpu7x:2x2x1
jax: 0.10.0
libtpu: 0.0.40
codegen_flags: <defaults>
</compile_context>

<pallas_src>
import jax
import jax.numpy as jnp
from jax.experimental import pallas as pl
from jax.experimental.pallas import tpu as pltpu


# ---------------------------------------------------------------------------
# Kernels
# ---------------------------------------------------------------------------
def _sub_tensor_kernel(a_ref, b_ref, o_ref):
    # torch: c = a - b ; return c - c   (keeps NaN/Inf propagation parity)
    dt = o_ref.dtype
    c = a_ref[...].astype(dt) - b_ref[...].astype(dt)
    o_ref[...] = c - c


def _sub_scalar_kernel(b_ref, a_ref, o_ref):
    # torch: (a * a).sub(b.item())
    a = a_ref[...]
    o_ref[...] = a * a - b_ref[0]


# ---------------------------------------------------------------------------
# Slab helpers (glue only)
# ---------------------------------------------------------------------------
_LANEW = 1024          # lane-dense last dim (multiple of 128 -> unmasked vst)
_TR_TENSOR = 512       # 3 streams x 2 bufs x 2 MiB = 12 MiB  (fits v5e default)
_TR_SCALAR = 1024      # 2 streams x 2 bufs x 4 MiB = 16 MiB  (explicit limit set)


def _round_up(x, m):
    return ((x + m - 1) // m) * m


def _to_slab(x):
    """Flatten to (rows, _LANEW).  Pads only the ragged tail (< _LANEW elems)."""
    n = x.size
    rows = pl.cdiv(n, _LANEW)
    flat = x.reshape(-1)
    pad = rows * _LANEW - n
    if pad:
        # TODO(synk): handle the < 1024-element tail with a masked in-kernel
        # store instead of this pad (avoids one copy for ragged sizes).
        flat = jnp.pad(flat, (0, pad))
    return flat.reshape(rows, _LANEW), n


def _from_slab(y2d, n, shape):
    if y2d.size == n:
        return y2d.reshape(shape)
    return y2d.reshape(-1)[:n].reshape(shape)


def _row_tiling(rows, max_tr):
    """Pick a row-tile.  Multiple of 8 (or full extent); >=2 steps when possible."""
    if rows <= 8:
        return rows, 1                      # full-extent block (always legal)
    half = _round_up((rows + 1) // 2, 8)    # keep >=2 grid steps for v7x megacore
    tr = min(max_tr, half)
    return tr, pl.cdiv(rows, tr)


# ---------------------------------------------------------------------------
# Wrapper reproducing SimpleSubtractModel.forward
# ---------------------------------------------------------------------------
def simple_subtract(a, b):
    a = jnp.asarray(a)
    b = jnp.asarray(b)

    if b.ndim == 0:
        # branch: b.size() == torch.Size([])  ->  (a * a).sub(b.item())
        a2d, n = _to_slab(a)
        rows = a2d.shape[0]
        tr, steps = _row_tiling(rows, _TR_SCALAR)
        b_smem = jnp.reshape(b, (1,)).astype(a.dtype)
        out2d = pl.pallas_call(
            _sub_scalar_kernel,
            out_shape=jax.ShapeDtypeStruct(a2d.shape, a.dtype),
            grid=(steps,),
            in_specs=[
                pl.BlockSpec(memory_space=pltpu.MemorySpace.SMEM),  # scalar b
                pl.BlockSpec((tr, _LANEW), lambda i: (i, 0)),       # a tile
            ],
            out_specs=pl.BlockSpec((tr, _LANEW), lambda i: (i, 0)),
            compiler_params=pltpu.CompilerParams(
                dimension_semantics=("parallel",),
                vmem_limit_bytes=32 << 20),
        )(b_smem, a2d)
        return _from_slab(out2d, n, a.shape)

    # branch: c = a - b ; return c - c   (broadcasting like torch.sub)
    out_shape = jnp.broadcast_shapes(a.shape, b.shape)
    out_dtype = jnp.result_type(a.dtype, b.dtype)
    # Shape broadcast only when actually required; dtype promotion is done
    # in-kernel, so the common same-shape path adds zero wrapper HBM traffic.
    # TODO(synk): express broadcasting via a stride-0 / fixed-row index_map
    # instead of materializing jnp.broadcast_to for mismatched shapes.
    if a.shape != out_shape:
        a = jnp.broadcast_to(a, out_shape)
    if b.shape != out_shape:
        b = jnp.broadcast_to(b, out_shape)

    a2d, n = _to_slab(a)
    b2d, _ = _to_slab(b)
    rows = a2d.shape[0]
    tr, steps = _row_tiling(rows, _TR_TENSOR)
    out2d = pl.pallas_call(
        _sub_tensor_kernel,
        out_shape=jax.ShapeDtypeStruct(a2d.shape, out_dtype),
        grid=(steps,),
        in_specs=[
            pl.BlockSpec((tr, _LANEW), lambda i: (i, 0)),
            pl.BlockSpec((tr, _LANEW), lambda i: (i, 0)),
        ],
        out_specs=pl.BlockSpec((tr, _LANEW), lambda i: (i, 0)),
        compiler_params=pltpu.CompilerParams(
            dimension_semantics=("parallel",)),
    )(a2d, b2d)
    return _from_slab(out2d, n, out_shape)


# ---------------------------------------------------------------------------
# Main
# ---------------------------------------------------------------------------
if __name__ == "__main__":
    key = jax.random.PRNGKey(0)
    k1, k2, k3 = jax.random.split(key, 3)

    # Tensor-b branch (NCHW-shaped inputs, like the glow sub test).
    a = jax.random.normal(k1, (2, 4, 16, 16), dtype=jnp.float32)
    b = jax.random.normal(k2, (2, 4, 16, 16), dtype=jnp.float32)
    out_tensor = jax.block_until_ready(simple_subtract(a, b))
    ref_tensor = (a - b) - (a - b)
    assert out_tensor.shape == a.shape
    assert jnp.allclose(out_tensor, ref_tensor, atol=1e-6)

    # Scalar-b branch: (a * a).sub(b.item())
    b_scalar = jax.random.normal(k3, (), dtype=jnp.float32)
    out_scalar = jax.block_until_ready(simple_subtract(a, b_scalar))
    ref_scalar = a * a - b_scalar
    assert out_scalar.shape == a.shape
    assert jnp.allclose(out_scalar, ref_scalar, atol=1e-5)

    # Ragged / broadcast sanity check (rows not a multiple of 8, b broadcast).
    a3 = jax.random.normal(k1, (3, 5, 11, 7), dtype=jnp.float32)      # 1155 elems
    b3 = jax.random.normal(k2, (1, 5, 1, 7), dtype=jnp.float32)
    out3 = jax.block_until_ready(simple_subtract(a3, b3))
    ref3 = (a3 - b3) - (a3 - b3)
    assert out3.shape == ref3.shape
    assert jnp.allclose(out3, ref3, atol=1e-6)

    print("KERNEL_OK")
</pallas_src>

<mosaic_0001>
module attributes {stable_mosaic.version = 11 : i64} {
  func.func @_sub_tensor_kernel(%arg0: i32, %arg1: memref<2x1024xf32, #tpu.memory_space<vmem>>, %arg2: memref<2x1024xf32, #tpu.memory_space<vmem>>, %arg3: memref<2x1024xf32, #tpu.memory_space<vmem>>) attributes {dimension_semantics = [#tpu.dimension_semantics<parallel>], iteration_bounds = array<i64: 1>, scalar_prefetch = 0 : i64, scratch_operands = 0 : i64, tpu.core_type = #tpu.core_type<tc>, window_params = [{transform_indices = @transform_0, window_bounds = array<i64: 2, 1024>}, {transform_indices = @transform_1, window_bounds = array<i64: 2, 1024>}, {transform_indices = @transform_2, window_bounds = array<i64: 2, 1024>}]} {
    %c0 = arith.constant 0 : index
    %c0_0 = arith.constant 0 : index
    %0 = vector.load %arg1[%c0, %c0_0] : memref<2x1024xf32, #tpu.memory_space<vmem>>, vector<2x1024xf32>
    %c0_1 = arith.constant 0 : index
    %c0_2 = arith.constant 0 : index
    %1 = vector.load %arg2[%c0_1, %c0_2] : memref<2x1024xf32, #tpu.memory_space<vmem>>, vector<2x1024xf32>
    %2 = arith.subf %0, %1 : vector<2x1024xf32>
    %3 = arith.subf %2, %2 : vector<2x1024xf32>
    %c0_3 = arith.constant 0 : index
    %c0_4 = arith.constant 0 : index
    %4 = vector.load %arg3[%c0_3, %c0_4] : memref<2x1024xf32, #tpu.memory_space<vmem>>, vector<2x1024xf32>
    tpu.vector_store %arg3[%c0_3, %c0_4], %3 {strides = array<i32>} : memref<2x1024xf32, #tpu.memory_space<vmem>>, vector<2x1024xf32>,
    return
  }
  func.func @transform_0(%arg0: i32) -> (i32, i32) {
    %c0_i32 = arith.constant 0 : i32
    %c0_i32_0 = arith.constant 0 : i32
    return %arg0, %c0_i32 : i32, i32
  }
  func.func @transform_1(%arg0: i32) -> (i32, i32) {
    %c0_i32 = arith.constant 0 : i32
    %c0_i32_0 = arith.constant 0 : i32
    return %arg0, %c0_i32 : i32, i32
  }
  func.func @transform_2(%arg0: i32) -> (i32, i32) {
    %c0_i32 = arith.constant 0 : i32
    %c0_i32_0 = arith.constant 0 : i32
    return %arg0, %c0_i32 : i32, i32
  }
}

</mosaic_0001>

<llo_original>
// kernel: tpu_custom_call.1
$region0: #{tpu_custom_call.1}
  #allocation0 [shape = 'u32[]', space=smem, size = 0x4, offset = 0x4, fixed_abs, tag = 'smem constant byte address 0x4 - core index']
  #allocation1 [shape = 'u32[144,128]{1,0:T(1,128)}', space=vmem, size = 0x12000, scoped, tag = 'internal scratch']
  %s0 = inlined_call_operand.hbm [shape: f32[2,1024], index: 0, kind: input, shape index: {}]
  %s1 = inlined_call_operand.hbm [shape: f32[2,1024], index: 1, kind: input, shape index: {}]
  %s2 = inlined_call_operand.hbm [shape: f32[2,1024], index: 2, kind: output, shape index: {}]
  %s3 = sld [smem:[#allocation0]]
  $region26: #{tpu_custom_call.1} parent=0
    _
  %s5 = ssub.s32 1, %s3
  %s6 = scalar_select 0, %s5, %s3
  $region1: #{tpu_custom_call.1} parent=0
    #allocation2 [shape = 'u8[8192]{0}', space=vmem, size = 0x2000, scoped, tag = 'input window, operand 0, single buffered']
    #allocation3 [shape = 's32[1]{0}', space=sflag, size = 0x4, scoped, tag = 'scoped memory for tpu_custom_call.1']
    #allocation4 [shape = 's32[1]{0}', space=sflag, size = 0x4, scoped, tag = 'scoped memory for tpu_custom_call.1']
    #allocation5 [shape = 'u8[8192]{0}', space=vmem, size = 0x2000, scoped, tag = 'input window, operand 1, single buffered']
    #allocation6 [shape = 's32[1]{0}', space=sflag, size = 0x4, scoped, tag = 'scoped memory for tpu_custom_call.1']
    #allocation7 [shape = 'u8[8192]{0}', space=vmem, size = 0x2000, scoped, tag = 'output window, operand 0, single buffered']
    %7 = vsyncpa [#allocation3], 0
    %8 = vsyncpa [#allocation6], 0
    %9 = vsyncpa [#allocation4], 0
    // Predicated region
    $region2: #{tpu_custom_call.1} parent=1 // pred_check
      _
    $region3: #{tpu_custom_call.1} parent=1 // pred_check_branch
      %11 = sbr.rel (0) target = $region5
    $region4: #{tpu_custom_call.1} parent=1 // pred_region
      %s13 = ssub.s32 256, 256
      %14 = vsyncadd [#allocation3], %s13
      %s16 = sshll.u32 [#allocation2], 4
      %s17 = int_to_ptr.vmem [resolvable:$true] %s16
      %19 = dma.hbm_to_vmem [thread:$0]  %s0, 256, %s17, [#allocation3]
    $region5: #{tpu_custom_call.1} parent=1 // pred_fallthru
      _
    // Predicated region
    $region6: #{tpu_custom_call.1} parent=1 // pred_check
      _
    $region7: #{tpu_custom_call.1} parent=1 // pred_check_branch
      %21 = sbr.rel (0) target = $region9
    $region8: #{tpu_custom_call.1} parent=1 // pred_region
      %s23 = ssub.s32 256, 256
      %24 = vsyncadd [#allocation6], %s23
      %s26 = sshll.u32 [#allocation5], 4
      %s27 = int_to_ptr.vmem [resolvable:$true] %s26
      %29 = dma.hbm_to_vmem [thread:$0]  %s1, 256, %s27, [#allocation6]
    $region9: #{tpu_custom_call.1} parent=1 // pred_fallthru
      _
    // Predicated region
    $region10: #{tpu_custom_call.1} parent=1 // pred_check
      _
    $region11: #{tpu_custom_call.1} parent=1 // pred_check_branch
      %31 = sbr.rel (0) target = $region13
    $region12: #{tpu_custom_call.1} parent=1 // pred_region
      %32 = dma.done [#allocation3], 256
    $region13: #{tpu_custom_call.1} parent=1 // pred_fallthru
      _
    // Predicated region
    $region14: #{tpu_custom_call.1} parent=1 // pred_check
      _
    $region15: #{tpu_custom_call.1} parent=1 // pred_check_branch
      %34 = sbr.rel (0) target = $region17
    $region16: #{tpu_custom_call.1} parent=1 // pred_region
      %35 = dma.done [#allocation6], 256
    $region17: #{tpu_custom_call.1} parent=1 // pred_fallthru
      _
    %v36 = vld [vmem:[#allocation2] sm:$0xff]
    %v37 = vld [vmem:[#allocation2 + $0x8] sm:$0xff]
    %v38 = vld [vmem:[#allocation5] sm:$0xff]
    %v39 = vld [vmem:[#allocation5 + $0x8] sm:$0xff]
    %v40 = vsub.f32 %v36, %v38
    %v41 = vsub.f32 %v37, %v39
    %v42 = vsub.f32 %v40, %v40
    %v43 = vsub.f32 %v41, %v41
    %44 = vst [vmem:[#allocation7] sm:$0xff] %v42
    %45 = vst [vmem:[#allocation7 + $0x8] sm:$0xff] %v43
    // Predicated region
    $region18: #{tpu_custom_call.1} parent=1 // pred_check
      _
    $region19: #{tpu_custom_call.1} parent=1 // pred_check_branch
      %47 = sbr.rel (0) target = $region21
    $region20: #{tpu_custom_call.1} parent=1 // pred_region
      %s49 = ssub.s32 256, 256
      %50 = vsyncadd [#allocation4], %s49
      %s52 = sshll.u32 [#allocation7], 4
      %s53 = int_to_ptr.vmem [resolvable:$true] %s52
      %55 = dma.vmem_to_hbm [thread:$0]  %s53, 256, %s2, [#allocation4]
    $region21: #{tpu_custom_call.1} parent=1 // pred_fallthru
      _
    // Predicated region
    $region22: #{tpu_custom_call.1} parent=1 // pred_check
      _
    $region23: #{tpu_custom_call.1} parent=1 // pred_check_branch
      %57 = sbr.rel (0) target = $region25
    $region24: #{tpu_custom_call.1} parent=1 // pred_region
      %58 = dma.done [#allocation4], 256
    $region25: #{tpu_custom_call.1} parent=1 // pred_fallthru
      _
    %59 = vsyncpa [#allocation3], 1
    %60 = vsyncpa [#allocation6], 1
    %61 = vsyncpa [#allocation4], 1

</llo_original>
